<compile_context>
chip_gen: v5e
topology: v5e:2x2
jax: 0.10.0
libtpu: 0.0.40
codegen_flags: <defaults>
</compile_context>

<pallas_src>
import functools

import jax
import jax.numpy as jnp
from jax.experimental import pallas as pl
from jax.experimental.pallas import tpu as pltpu


# ----------------------------------------------------------------------------
# Fused kernel body: one LSTM layer per grid step, FC on the last step
# ----------------------------------------------------------------------------
def _make_kernel(num_layers, hidden, in_max, batch_tile):
    def kernel(x_ref, w_ref, b_ref, fcw_ref, fcb_ref, out_ref, h_ref):
        layer = pl.program_id(1)

        @pl.when(layer == 0)
        def _():
            h_ref[...] = x_ref[...]                 # x already zero-padded to in_max columns

        w = w_ref[0]                                # (in_max, 3H) bf16, gate order [i | o | g]
        b = b_ref[0]                                # (1, 3H) f32
        gates = jnp.dot(h_ref[...], w, preferred_element_type=jnp.float32) + b

        sig = jax.nn.sigmoid(gates[:, :2 * hidden])  # contiguous [i | o]
        g_g = jnp.tanh(gates[:, 2 * hidden:])        # [g]
        i_g = sig[:, :hidden]
        o_g = sig[:, hidden:]
        h_new = o_g * jnp.tanh(i_g * g_g)            # c0 == 0  ->  c = i * g

        @pl.when(layer == num_layers - 1)
        def _():
            out_ref[...] = (
                jnp.dot(h_new, fcw_ref[...], preferred_element_type=jnp.float32)
                + fcb_ref[...]
            )

        if in_max > hidden:                          # static: keep h padded for next layer's W
            h_new = jnp.concatenate(
                [h_new, jnp.zeros((batch_tile, in_max - hidden), jnp.float32)], axis=1)
        h_ref[...] = h_new

    return kernel


def _vmem_limit_bytes():
    """Per-generation scoped-VMEM limit (~56 MiB ceiling on v7x, up to 100 MiB on v5e/v6e)."""
    try:
        cap = int(pltpu.get_tpu_info().vmem_capacity_bytes)
    except Exception:
        cap = 64 * 1024 * 1024
    return int(min(cap - cap // 8, 100 * 1024 * 1024))


# ----------------------------------------------------------------------------
# Whole-model forward: one jit, one pallas_call
# ----------------------------------------------------------------------------
@functools.partial(jax.jit, static_argnames=("output_size",))
def lstm_model_forward(x, params, *, output_size):
    """x: (batch, input_size) -> (batch, output_size). Matches LSTMModel.forward.

    Valid ONLY because the module runs seq_len == 1 (x.unsqueeze(1)) with zero (h0, c0);
    with T > 1 or nonzero initial states this specialized kernel would be wrong.
    """
    w_stack = params["w_stack"]          # (L, in_max, 3H) bf16
    b_stack = params["b_stack"]          # (L, 1, 3H)      f32
    fc_w = params["fc_w"]                # (H, out_pad)    bf16
    fc_b = params["fc_b"]                # (1, out_pad)    f32

    num_layers, in_max, three_h = w_stack.shape
    hidden = three_h // 3
    out_pad = fc_w.shape[1]
    batch, input_size = x.shape

    x_pad = x.astype(jnp.float32)
    if input_size < in_max:
        x_pad = jnp.pad(x_pad, ((0, 0), (0, in_max - input_size)))

    # Batch tiling: >1 tile only when batch is big enough that using both v7x TensorCores
    # pays for re-streaming the weights once per tile; harmless single tile otherwise.
    if batch >= 128 and batch % 16 == 0:
        batch_tile = batch // 2
    else:
        batch_tile = batch
    num_b_tiles = batch // batch_tile

    flops = 2 * batch * in_max * three_h * num_layers + 2 * batch * hidden * out_pad
    transcendentals = num_layers * batch * 4 * hidden
    bytes_accessed = (x_pad.size * 4
                      + num_b_tiles * (w_stack.size * 2 + b_stack.size * 4
                                       + fc_w.size * 2 + fc_b.size * 4)
                      + batch * out_pad * 4)

    kernel = _make_kernel(num_layers, hidden, in_max, batch_tile)
    out = pl.pallas_call(
        kernel,
        out_shape=jax.ShapeDtypeStruct((batch, out_pad), jnp.float32),
        grid_spec=pltpu.PrefetchScalarGridSpec(
            num_scalar_prefetch=0,
            grid=(num_b_tiles, num_layers),
            in_specs=[
                pl.BlockSpec((batch_tile, in_max), lambda bt, l: (bt, 0)),       # x
                pl.BlockSpec((1, in_max, three_h), lambda bt, l: (l, 0, 0)),     # stacked W
                pl.BlockSpec((1, 1, three_h), lambda bt, l: (l, 0, 0)),          # stacked bias
                pl.BlockSpec((hidden, out_pad), lambda bt, l: (0, 0)),           # fc W
                pl.BlockSpec((1, out_pad), lambda bt, l: (0, 0)),                # fc b
            ],
            out_specs=pl.BlockSpec((batch_tile, out_pad), lambda bt, l: (bt, 0)),
            scratch_shapes=[pltpu.VMEM((batch_tile, in_max), jnp.float32)],      # resident h
        ),
        compiler_params=pltpu.CompilerParams(
            dimension_semantics=("parallel", "arbitrary"),
            vmem_limit_bytes=_vmem_limit_bytes(),
        ),
        cost_estimate=pl.CostEstimate(
            flops=flops,
            transcendentals=transcendentals,
            bytes_accessed=bytes_accessed,
        ),
    )(x_pad, w_stack, b_stack, fc_w, fc_b)

    return out[:, :output_size]


# ----------------------------------------------------------------------------
# PyTorch-layout params (nn.LSTM / nn.Linear conventions) + kernel packing
# ----------------------------------------------------------------------------
def init_torch_style_params(key, input_size, hidden_size, num_layers, output_size):
    """PyTorch layout: W_ih (4H,in), W_hh (4H,H), gate order [i,f,g,o]; U(-1/sqrt(H), +)."""
    bound = 1.0 / float(hidden_size) ** 0.5
    layers = []
    for layer in range(num_layers):
        in_sz = input_size if layer == 0 else hidden_size
        key, k1, k2, k3, k4 = jax.random.split(key, 5)
        layers.append({
            "w_ih": jax.random.uniform(k1, (4 * hidden_size, in_sz), jnp.float32, -bound, bound),
            "w_hh": jax.random.uniform(k2, (4 * hidden_size, hidden_size), jnp.float32, -bound, bound),
            "b_ih": jax.random.uniform(k3, (4 * hidden_size,), jnp.float32, -bound, bound),
            "b_hh": jax.random.uniform(k4, (4 * hidden_size,), jnp.float32, -bound, bound),
        })
    key, k5, k6 = jax.random.split(key, 3)
    fc_w = jax.random.uniform(k5, (output_size, hidden_size), jnp.float32, -bound, bound)
    fc_b = jax.random.uniform(k6, (output_size,), jnp.float32, -bound, bound)
    return {"lstm": layers, "fc_w": fc_w, "fc_b": fc_b, "hidden_size": hidden_size}


def pack_kernel_params(torch_params, output_size):
    """One-time layout plumbing outside the kernel:
       * drop W_hh (h0 == 0) and forget-gate rows (c0 == 0, T == 1)
       * reorder remaining gate rows to [i, o, g]; pre-transpose to (in, 3H)
       * zero-pad layer-0 rows to in_max and stack all layers into one tensor
       * pack biases into one (L, 1, 3H) f32 tensor
       * pad FC output columns to a multiple of 128 lanes
       * cast weights to bf16 (activations / accumulation stay f32 in the kernel)
    """
    H = torch_params["hidden_size"]
    layers = torch_params["lstm"]
    input_size = layers[0]["w_ih"].shape[1]
    in_max = max(input_size, H)
    out_pad = ((output_size + 127) // 128) * 128

    w_list, b_list = [], []
    for lp in layers:
        w_ih = lp["w_ih"]                                   # (4H, in_l), order [i, f, g, o]
        bsum = lp["b_ih"] + lp["b_hh"]
        rows = jnp.concatenate(
            [w_ih[0:H], w_ih[3 * H:4 * H], w_ih[2 * H:3 * H]], axis=0)   # (3H, in_l) [i,o,g]
        bias = jnp.concatenate(
            [bsum[0:H], bsum[3 * H:4 * H], bsum[2 * H:3 * H]], axis=0)
        w_t = rows.T                                        # (in_l, 3H)
        if w_t.shape[0] < in_max:
            w_t = jnp.pad(w_t, ((0, in_max - w_t.shape[0]), (0, 0)))
        w_list.append(w_t)
        b_list.append(bias.reshape(1, 3 * H))

    fc_w_t = torch_params["fc_w"].T                         # (H, out)
    if fc_w_t.shape[1] < out_pad:
        fc_w_t = jnp.pad(fc_w_t, ((0, 0), (0, out_pad - fc_w_t.shape[1])))
    fc_b = torch_params["fc_b"]
    if fc_b.shape[0] < out_pad:
        fc_b = jnp.pad(fc_b, (0, out_pad - fc_b.shape[0]))

    return {
        "w_stack": jnp.stack(w_list).astype(jnp.bfloat16),      # (L, in_max, 3H)
        "b_stack": jnp.stack(b_list).astype(jnp.float32),       # (L, 1, 3H)
        "fc_w": fc_w_t.astype(jnp.bfloat16),                    # (H, out_pad)
        "fc_b": fc_b.reshape(1, out_pad).astype(jnp.float32),   # (1, out_pad)
    }


# ----------------------------------------------------------------------------
# Pure-JAX reference with FULL LSTM semantics (all gates, W_hh, zero states).
# Uses the same bf16-quantized W_ih / fc_w the kernel sees, so the comparison
# isolates kernel correctness from the (intended) weight quantization.
# ----------------------------------------------------------------------------
def reference_forward(x, torch_params):
    H = torch_params["hidden_size"]
    batch = x.shape[0]
    hi = jax.lax.Precision.HIGHEST
    layer_in = x
    for lp in torch_params["lstm"]:
        w_ih = lp["w_ih"].astype(jnp.bfloat16).astype(jnp.float32)
        h = jnp.zeros((batch, H), jnp.float32)
        c = jnp.zeros((batch, H), jnp.float32)
        gates = (jnp.dot(layer_in, w_ih.T, precision=hi)
                 + jnp.dot(h, lp["w_hh"].T, precision=hi)
                 + lp["b_ih"] + lp["b_hh"])
        i_g = jax.nn.sigmoid(gates[:, 0:H])
        f_g = jax.nn.sigmoid(gates[:, H:2 * H])
        g_g = jnp.tanh(gates[:, 2 * H:3 * H])
        o_g = jax.nn.sigmoid(gates[:, 3 * H:4 * H])
        c = f_g * c + i_g * g_g
        layer_in = o_g * jnp.tanh(c)
    fc_w = torch_params["fc_w"].astype(jnp.bfloat16).astype(jnp.float32)
    return jnp.dot(layer_in, fc_w.T, precision=hi) + torch_params["fc_b"]


if __name__ == "__main__":
    batch = 8
    input_size = 16
    hidden_size = 32
    num_layers = 2
    output_size = 8

    key = jax.random.PRNGKey(0)
    key, xkey = jax.random.split(key)
    x = jax.random.normal(xkey, (batch, input_size), jnp.float32)

    torch_params = init_torch_style_params(
        key, input_size, hidden_size, num_layers, output_size)
    params = pack_kernel_params(torch_params, output_size)

    out = lstm_model_forward(x, params, output_size=output_size)
    out = jax.block_until_ready(out)

    ref = reference_forward(x, torch_params)
    assert out.shape == (batch, output_size)
    max_err = float(jnp.max(jnp.abs(out - ref)))
    assert jnp.allclose(out, ref, atol=1e-2, rtol=1e-2), f"mismatch vs reference (max err {max_err})"

    print("KERNEL_OK")
</pallas_src>

<mosaic_0001>
module attributes {stable_mosaic.version = 11 : i64} {
  func.func @kernel(%arg0: i32, %arg1: i32, %arg2: memref<8x32xf32, #tpu.memory_space<vmem>>, %arg3: memref<1x32x96xbf16, #tpu.memory_space<vmem>>, %arg4: memref<1x1x96xf32, #tpu.memory_space<vmem>>, %arg5: memref<32x128xbf16, #tpu.memory_space<vmem>>, %arg6: memref<1x128xf32, #tpu.memory_space<vmem>>, %arg7: memref<8x128xf32, #tpu.memory_space<vmem>>, %arg8: memref<8x32xf32, #tpu.memory_space<vmem>>) attributes {dimension_semantics = [#tpu.dimension_semantics<parallel>, #tpu.dimension_semantics<arbitrary>], iteration_bounds = array<i64: 1, 2>, scalar_prefetch = 0 : i64, scratch_operands = 1 : i64, tpu.core_type = #tpu.core_type<tc>, window_params = [{transform_indices = @transform_0, window_bounds = array<i64: 8, 32>}, {transform_indices = @transform_1, window_bounds = array<i64: 1, 32, 96>}, {transform_indices = @transform_2, window_bounds = array<i64: 1, 1, 96>}, {pipeline_mode = #tpu.pipeline_mode<synchronous>, transform_indices = @transform_3, window_bounds = array<i64: 32, 128>}, {pipeline_mode = #tpu.pipeline_mode<synchronous>, transform_indices = @transform_4, window_bounds = array<i64: 1, 128>}, {transform_indices = @transform_5, window_bounds = array<i64: 8, 128>}]} {
    %c0_i32 = arith.constant 0 : i32
    %0 = arith.cmpi eq, %arg1, %c0_i32 : i32
    %1 = arith.extui %0 : i1 to i32
    %c0_i32_0 = arith.constant 0 : i32
    %2 = arith.cmpi ne, %1, %c0_i32_0 : i32
    scf.if %2 {
      %c0_12 = arith.constant 0 : index
      %c0_13 = arith.constant 0 : index
      %28 = vector.load %arg2[%c0_12, %c0_13] : memref<8x32xf32, #tpu.memory_space<vmem>>, vector<8x32xf32>
      %c0_14 = arith.constant 0 : index
      %c0_15 = arith.constant 0 : index
      %29 = vector.load %arg8[%c0_14, %c0_15] : memref<8x32xf32, #tpu.memory_space<vmem>>, vector<8x32xf32>
      tpu.vector_store %arg8[%c0_14, %c0_15], %28 {strides = array<i32>} : memref<8x32xf32, #tpu.memory_space<vmem>>, vector<8x32xf32>,
    } else {
    }
    %c0 = arith.constant 0 : index
    %c0_1 = arith.constant 0 : index
    %c0_2 = arith.constant 0 : index
    %3 = vector.load %arg3[%c0, %c0_1, %c0_2] : memref<1x32x96xbf16, #tpu.memory_space<vmem>>, vector<1x32x96xbf16>
    %4 = vector.shape_cast %3 : vector<1x32x96xbf16> to vector<32x96xbf16>
    %c0_3 = arith.constant 0 : index
    %c0_4 = arith.constant 0 : index
    %c0_5 = arith.constant 0 : index
    %5 = vector.load %arg4[%c0_3, %c0_4, %c0_5] : memref<1x1x96xf32, #tpu.memory_space<vmem>>, vector<1x1x96xf32>
    %6 = vector.shape_cast %5 : vector<1x1x96xf32> to vector<1x96xf32>
    %c0_6 = arith.constant 0 : index
    %c0_7 = arith.constant 0 : index
    %7 = vector.load %arg8[%c0_6, %c0_7] : memref<8x32xf32, #tpu.memory_space<vmem>>, vector<8x32xf32>
    %cst = arith.constant dense<0.000000e+00> : vector<8x96xf32>
    %8 = tpu.matmul %7, %4, %cst {dimension_numbers = #tpu.dot_dimension_numbers<[1], [0], [0], [1], [0, 0, 1, 1], [], []>} : vector<8x32xf32>, vector<32x96xbf16>, vector<8x96xf32> -> vector<8x96xf32>
    %9 = vector.broadcast %6 : vector<1x96xf32> to vector<8x96xf32>
    %10 = arith.addf %8, %9 : vector<8x96xf32>
    %11 = vector.extract_strided_slice %10 {offsets = [0, 0], sizes = [8, 64], strides = [1, 1]} : vector<8x96xf32> to vector<8x64xf32>
    %12 = arith.negf %11 : vector<8x64xf32>
    %13 = math.exp %12 : vector<8x64xf32>
    %cst_8 = arith.constant 1.000000e+00 : f32
    %14 = vector.broadcast %cst_8 : f32 to vector<8x64xf32>
    %15 = arith.addf %14, %13 : vector<8x64xf32>
    %16 = arith.divf %14, %15 : vector<8x64xf32>
    %17 = vector.extract_strided_slice %10 {offsets = [0, 64], sizes = [8, 32], strides = [1, 1]} : vector<8x96xf32> to vector<8x32xf32>
    %18 = math.tanh %17 : vector<8x32xf32>
    %19 = vector.extract_strided_slice %16 {offsets = [0, 0], sizes = [8, 32], strides = [1, 1]} : vector<8x64xf32> to vector<8x32xf32>
    %20 = vector.extract_strided_slice %16 {offsets = [0, 32], sizes = [8, 32], strides = [1, 1]} : vector<8x64xf32> to vector<8x32xf32>
    %21 = arith.mulf %19, %18 : vector<8x32xf32>
    %22 = math.tanh %21 : vector<8x32xf32>
    %23 = arith.mulf %20, %22 : vector<8x32xf32>
    %c1_i32 = arith.constant 1 : i32
    %24 = arith.cmpi eq, %arg1, %c1_i32 : i32
    %25 = arith.extui %24 : i1 to i32
    %c0_i32_9 = arith.constant 0 : i32
    %26 = arith.cmpi ne, %25, %c0_i32_9 : i32
    scf.if %26 {
      %c0_12 = arith.constant 0 : index
      %c0_13 = arith.constant 0 : index
      %28 = vector.load %arg5[%c0_12, %c0_13] : memref<32x128xbf16, #tpu.memory_space<vmem>>, vector<32x128xbf16>
      %cst_14 = arith.constant dense<0.000000e+00> : vector<8x128xf32>
      %29 = tpu.matmul %23, %28, %cst_14 {dimension_numbers = #tpu.dot_dimension_numbers<[1], [0], [0], [1], [0, 0, 1, 1], [], []>} : vector<8x32xf32>, vector<32x128xbf16>, vector<8x128xf32> -> vector<8x128xf32>
      %c0_15 = arith.constant 0 : index
      %c0_16 = arith.constant 0 : index
      %30 = vector.load %arg6[%c0_15, %c0_16] : memref<1x128xf32, #tpu.memory_space<vmem>>, vector<1x128xf32>
      %31 = vector.broadcast %30 : vector<1x128xf32> to vector<8x128xf32>
      %32 = arith.addf %29, %31 : vector<8x128xf32>
      %c0_17 = arith.constant 0 : index
      %c0_18 = arith.constant 0 : index
      %33 = vector.load %arg7[%c0_17, %c0_18] : memref<8x128xf32, #tpu.memory_space<vmem>>, vector<8x128xf32>
      tpu.vector_store %arg7[%c0_17, %c0_18], %32 {strides = array<i32>} : memref<8x128xf32, #tpu.memory_space<vmem>>, vector<8x128xf32>,
    } else {
    }
    %c0_10 = arith.constant 0 : index
    %c0_11 = arith.constant 0 : index
    %27 = vector.load %arg8[%c0_10, %c0_11] : memref<8x32xf32, #tpu.memory_space<vmem>>, vector<8x32xf32>
    tpu.vector_store %arg8[%c0_10, %c0_11], %23 {strides = array<i32>} : memref<8x32xf32, #tpu.memory_space<vmem>>, vector<8x32xf32>,
    return
  }
  func.func @transform_0(%arg0: i32, %arg1: i32) -> (i32, i32) {
    %c0_i32 = arith.constant 0 : i32
    %c0_i32_0 = arith.constant 0 : i32
    return %arg0, %c0_i32 : i32, i32
  }
  func.func @transform_1(%arg0: i32, %arg1: i32) -> (i32, i32, i32) {
    %c0_i32 = arith.constant 0 : i32
    %c0_i32_0 = arith.constant 0 : i32
    %c0_i32_1 = arith.constant 0 : i32
    return %arg1, %c0_i32, %c0_i32_0 : i32, i32, i32
  }
  func.func @transform_2(%arg0: i32, %arg1: i32) -> (i32, i32, i32) {
    %c0_i32 = arith.constant 0 : i32
    %c0_i32_0 = arith.constant 0 : i32
    %c0_i32_1 = arith.constant 0 : i32
    return %arg1, %c0_i32, %c0_i32_0 : i32, i32, i32
  }
  func.func @transform_3(%arg0: i32, %arg1: i32) -> (i32, i32) {
    %c0_i32 = arith.constant 0 : i32
    %c0_i32_0 = arith.constant 0 : i32
    %c0_i32_1 = arith.constant 0 : i32
    return %c0_i32, %c0_i32_0 : i32, i32
  }
  func.func @transform_4(%arg0: i32, %arg1: i32) -> (i32, i32) {
    %c0_i32 = arith.constant 0 : i32
    %c0_i32_0 = arith.constant 0 : i32
    %c0_i32_1 = arith.constant 0 : i32
    return %c0_i32, %c0_i32_0 : i32, i32
  }
  func.func @transform_5(%arg0: i32, %arg1: i32) -> (i32, i32) {
    %c0_i32 = arith.constant 0 : i32
    %c0_i32_0 = arith.constant 0 : i32
    return %arg0, %c0_i32 : i32, i32
  }
}

</mosaic_0001>

<llo_original>
// kernel: lstm_model_forward.1
$region0: #{lstm_model_forward.1}
  #allocation0 [shape = 'u32[]', space=smem, size = 0x4, offset = 0x4, fixed_abs, tag = 'smem constant byte address 0x4 - core index']
  #allocation1 [shape = 'u32[72,128]{1,0:T(1,128)}', space=vmem, size = 0x9000, scoped, tag = 'internal scratch']
  #allocation2 [shape = 'f32[8,32]{1,0:T(8,128)}', space=vmem, size = 0x1000, scoped, tag = 'scratch operand']
  %s0 = inlined_call_operand.vmem [shape: f32[8,32], index: 0, kind: input, shape index: {}]
  %s1 = inlined_call_operand.hbm [shape: bf16[2,32,96], index: 1, kind: input, shape index: {}]
  %s2 = inlined_call_operand.vmem [shape: f32[2,1,96], index: 2, kind: input, shape index: {}]
  %s3 = inlined_call_operand.vmem [shape: bf16[32,128], index: 3, kind: input, shape index: {}]
  %s4 = inlined_call_operand.vmem [shape: f32[1,128], index: 4, kind: input, shape index: {}]
  %s5 = inlined_call_operand.hbm [shape: f32[8,128], index: 5, kind: output, shape index: {}]
  %s6 = sld [smem:[#allocation0]]
  $region65: #{lstm_model_forward.1} parent=0
    _
  %s8 = ssub.s32 1, %s6
  %s9 = scalar_select 0, %s8, %s6
  $region1: #{lstm_model_forward.1} parent=0
    #allocation3 [shape = 'u8[16384]{0}', space=vmem, size = 0x4000, scoped, tag = 'input window, operand 1']
    #allocation4 [shape = 's32[2]{0}', space=sflag, size = 0x8, scoped, tag = 'scoped memory for lstm_model_forward.1']
    #allocation5 [shape = 's32[2]{0}', space=sflag, size = 0x8, scoped, tag = 'scoped memory for lstm_model_forward.1']
    #allocation6 [shape = 'u8[4096]{0}', space=vmem, size = 0x1000, scoped, tag = 'output window, operand 0, single buffered']
    %10 = vsyncpa [#allocation4], 0
    %s11 = scalar_lea.sflag [#allocation4], 1
    %12 = vsyncpa %s11, 0
    %13 = vsyncpa [#allocation5], 0
    loop: start=0, step=1, limit=4
    $region2: #{lstm_model_forward.1} parent=1 // loop_pre_header
      _
    $region3: #{lstm_model_forward.1} parent=1 // loop_header
      %s15 = sphi 0, %s19
      %p16 = scmp.ge.s32.totalorder %s15, 4
      %s22 = sphi 0, %s34
      %s23 = sphi 0, %s30
      %s24 = sphi 0, %s22
      %s25 = sphi 0, %s23
      %s26 = sphi 0, %s24
      %s27 = sphi 0, %s25
      %s37 = sphi 0, %s39
      %s40 = sphi 0, %s37
      %s41 = sphi 0, %s40
      %s57 = sphi 0, %s41
      %s63 = sphi 0, %s65
      %s66 = sphi 0, %s63
      %s67 = sphi 0, %s66
      %s83 = sphi 0, %s67
      %s89 = sphi 0, %s91
      %s92 = sphi 0, %s89
      %s93 = sphi 0, %s92
      %s109 = sphi 0, %s93
      %s113 = sphi 0, %s113
      %s115 = sphi 0, %s113
      %s116 = sphi 0, %s115
      %s130 = sphi 0, %s116
      %s134 = sphi 0, %s134
      %s136 = sphi 0, %s134
      %s137 = sphi 0, %s136
      %s151 = sphi 0, %s137
      %s157 = sphi 0, %s159
      %s160 = sphi 0, %s157
      %s161 = sphi 0, %s160
      %s177 = sphi 0, %s161
    $region4: #{lstm_model_forward.1} parent=1 // loop_header_branch
      %18 = sbr.rel (%p16) target = $region8
    $region5: #{lstm_model_forward.1} parent=1 // loop_body
      %s20 = ssub.s32 %s15, 1
      %s21 = ssub.s32 %s15, 2
      %s28 = sadd.s32 1, %s23
      %p29 = scmp.ge.s32.totalorder %s28, 2
      %s30 = scalar_select %p29, 0, %s28
      %s31 = sadd.s32 1, %s22
      %s32 = scalar_select %p29, %s31, %s22
      %p33 = scmp.ge.s32.totalorder %s32, 1
      %s34 = scalar_select %p33, 0, %s32
      %s35 = ssub.s32 %s22, %s34
      %p36 = scmp.eq.s32.totalorder %s35, 0
      %s38 = sadd.s32 %s37, 1
      %s39 = scalar_select %p36, %s37, %s38
      %p42 = pneg %p36
      %p43 = scmp.eq.s32.totalorder %s15, 1
      %p44 = por %p42, %p43
      %p45 = scmp.ne.s32.totalorder %s37, %s40
      %p46 = scmp.eq.s32.totalorder %s15, 0
      %p47 = por %p45, %p46
      %p48 = scmp.ne.s32.totalorder %s37, %s40
      %p49 = scmp.eq.s32.totalorder %s20, 1
      %p50 = por %p48, %p49
      %p51 = scmp.ne.s32.totalorder %s40, %s41
      %p52 = scmp.eq.s32.totalorder %s20, 0
      %p53 = por %p51, %p52
      %p54 = scmp.ne.s32.totalorder %s40, %s41
      %p55 = scmp.eq.s32.totalorder %s21, 1
      %p56 = por %p54, %p55
      %p58 = scmp.ne.s32.totalorder %s41, %s57
      %p59 = scmp.eq.s32.totalorder %s21, 0
      %p60 = por %p58, %p59
      %s61 = ssub.s32 %s23, %s30
      %p62 = scmp.eq.s32.totalorder %s61, 0
      %s64 = sadd.s32 %s63, 1
      %s65 = scalar_select %p62, %s63, %s64
      %p68 = pneg %p62
      %p69 = scmp.eq.s32.totalorder %s15, 1
      %p70 = por %p68, %p69
      %p71 = scmp.ne.s32.totalorder %s63, %s66
      %p72 = scmp.eq.s32.totalorder %s15, 0
      %p73 = por %p71, %p72
      %p74 = scmp.ne.s32.totalorder %s63, %s66
      %p75 = scmp.eq.s32.totalorder %s20, 1
      %p76 = por %p74, %p75
      %p77 = scmp.ne.s32.totalorder %s66, %s67
      %p78 = scmp.eq.s32.totalorder %s20, 0
      %p79 = por %p77, %p78
      %p80 = scmp.ne.s32.totalorder %s66, %s67
      %p81 = scmp.eq.s32.totalorder %s21, 1
      %p82 = por %p80, %p81
      %p84 = scmp.ne.s32.totalorder %s67, %s83
      %p85 = scmp.eq.s32.totalorder %s21, 0
      %p86 = por %p84, %p85
      %s87 = ssub.s32 %s23, %s30
      %p88 = scmp.eq.s32.totalorder %s87, 0
      %s90 = sadd.s32 %s89, 1
      %s91 = scalar_select %p88, %s89, %s90
      %p94 = pneg %p88
      %p95 = scmp.eq.s32.totalorder %s15, 1
      %p96 = por %p94, %p95
      %p97 = scmp.ne.s32.totalorder %s89, %s92
      %p98 = scmp.eq.s32.totalorder %s15, 0
      %p99 = por %p97, %p98
      %p100 = scmp.ne.s32.totalorder %s89, %s92
      %p101 = scmp.eq.s32.totalorder %s20, 1
      %p102 = por %p100, %p101
      %p103 = scmp.ne.s32.totalorder %s92, %s93
      %p104 = scmp.eq.s32.totalorder %s20, 0
      %p105 = por %p103, %p104
      %p106 = scmp.ne.s32.totalorder %s92, %s93
      %p107 = scmp.eq.s32.totalorder %s21, 1
      %p108 = por %p106, %p107
      %p110 = scmp.ne.s32.totalorder %s93, %s109
      %p111 = scmp.eq.s32.totalorder %s21, 0
      %p112 = por %p110, %p111
      %s114 = sadd.s32 %s113, 1
      %p117 = scmp.eq.s32.totalorder %s15, 1
      %p118 = scmp.ne.s32.totalorder %s113, %s115
      %p119 = scmp.eq.s32.totalorder %s15, 0
      %p120 = por %p118, %p119
      %p121 = scmp.ne.s32.totalorder %s113, %s115
      %p122 = scmp.eq.s32.totalorder %s20, 1
      %p123 = por %p121, %p122
      %p124 = scmp.ne.s32.totalorder %s115, %s116
      %p125 = scmp.eq.s32.totalorder %s20, 0
      %p126 = por %p124, %p125
      %p127 = scmp.ne.s32.totalorder %s115, %s116
      %p128 = scmp.eq.s32.totalorder %s21, 1
      %p129 = por %p127, %p128
      %p131 = scmp.ne.s32.totalorder %s116, %s130
      %p132 = scmp.eq.s32.totalorder %s21, 0
      %p133 = por %p131, %p132
      %s135 = sadd.s32 %s134, 1
      %p138 = scmp.eq.s32.totalorder %s15, 1
      %p139 = scmp.ne.s32.totalorder %s134, %s136
      %p140 = scmp.eq.s32.totalorder %s15, 0
      %p141 = por %p139, %p140
      %p142 = scmp.ne.s32.totalorder %s134, %s136
      %p143 = scmp.eq.s32.totalorder %s20, 1
      %p144 = por %p142, %p143
      %p145 = scmp.ne.s32.totalorder %s136, %s137
      %p146 = scmp.eq.s32.totalorder %s20, 0
      %p147 = por %p145, %p146
      %p148 = scmp.ne.s32.totalorder %s136, %s137
      %p149 = scmp.eq.s32.totalorder %s21, 1
      %p150 = por %p148, %p149
      %p152 = scmp.ne.s32.totalorder %s137, %s151
      %p153 = scmp.eq.s32.totalorder %s21, 0
      %p154 = por %p152, %p153
      %s155 = ssub.s32 %s22, %s34
      %p156 = scmp.eq.s32.totalorder %s155, 0
      %s158 = sadd.s32 %s157, 1
      %s159 = scalar_select %p156, %s157, %s158
      %p162 = pneg %p156
      %p163 = scmp.eq.s32.totalorder %s15, 1
      %p164 = por %p162, %p163
      %p165 = scmp.ne.s32.totalorder %s157, %s160
      %p166 = scmp.eq.s32.totalorder %s15, 0
      %p167 = por %p165, %p166
      %p168 = scmp.ne.s32.totalorder %s157, %s160
      %p169 = scmp.eq.s32.totalorder %s20, 1
      %p170 = por %p168, %p169
      %p171 = scmp.ne.s32.totalorder %s160, %s161
      %p172 = scmp.eq.s32.totalorder %s20, 0
      %p173 = por %p171, %p172
      %p174 = scmp.ne.s32.totalorder %s160, %s161
      %p175 = scmp.eq.s32.totalorder %s21, 1
      %p176 = por %p174, %p175
      %p178 = scmp.ne.s32.totalorder %s161, %s177
      %p179 = scmp.eq.s32.totalorder %s21, 0
      %p180 = por %p178, %p179
      %p181 = scmp.le.s32.totalorder 1, %s15
      %p182 = scmp.lt.s32.totalorder %s15, 3
      %p183 = pnand %p181, %p182
      %p184 = pneg %p183
      // Predicated region
      $region9: #{lstm_model_forward.1} parent=5 // pred_check
        _
      $region10: #{lstm_model_forward.1} parent=5 // pred_check_branch
        %186 = sbr.rel (%p183) target = $region12
      $region11: #{lstm_model_forward.1} parent=5 // pred_region
        %s187 = ssub.s32 %s15, 1
        // Predicated region
        $region13: #{lstm_model_forward.1} parent=11 // pred_check
          %p188 = pneg %p53
        $region14: #{lstm_model_forward.1} parent=11 // pred_check_branch
          %190 = sbr.rel (%p188) target = $region16
        $region15: #{lstm_model_forward.1} parent=11 // pred_region
          %p191 = scmp.lt.s32.totalorder %s24, 0
          %s192 = scalar_select %p191, %s24, 0
          %s193 = smul.addr %s192, 8
          %s194 = scalar_lea.vmem %s0, %s193
        $region16: #{lstm_model_forward.1} parent=11 // pred_fallthru
          _
        // Predicated region
        $region17: #{lstm_model_forward.1} parent=11 // pred_check
          %p195 = pneg %p126
        $region18: #{lstm_model_forward.1} parent=11 // pred_check_branch
          %197 = sbr.rel (%p195) target = $region20
        $region19: #{lstm_model_forward.1} parent=11 // pred_region
          _
        $region20: #{lstm_model_forward.1} parent=11 // pred_fallthru
          _
        // Predicated region
        $region21: #{lstm_model_forward.1} parent=11 // pred_check
          %p198 = pneg %p147
        $region22: #{lstm_model_forward.1} parent=11 // pred_check_branch
          %200 = sbr.rel (%p198) target = $region24
        $region23: #{lstm_model_forward.1} parent=11 // pred_region
          _
        $region24: #{lstm_model_forward.1} parent=11 // pred_fallthru
          _
      $region12: #{lstm_model_forward.1} parent=5 // pred_fallthru
        _
      %p201 = scmp.lt.s32.totalorder %s15, 2
      // Predicated region
      $region25: #{lstm_model_forward.1} parent=5 // pred_check
        %p202 = pneg %p201
      $region26: #{lstm_model_forward.1} parent=5 // pred_check_branch
        %204 = sbr.rel (%p202) target = $region28
      $region27: #{lstm_model_forward.1} parent=5 // pred_region
        // Predicated region
        $region29: #{lstm_model_forward.1} parent=27 // pred_check
          %p205 = pneg %p73
        $region30: #{lstm_model_forward.1} parent=27 // pred_check_branch
          %207 = sbr.rel (%p205) target = $region32
        $region31: #{lstm_model_forward.1} parent=27 // pred_region
          %s208 = sand.u32 %s63, 1
          %s209 = scalar_lea.sflag [#allocation4], %s208
          %s210 = sand.u32 %s63, 1
          %s211 = smul.addr %s210, 16
          %s212 = scalar_lea.vmem [#allocation3], %s211
          %214 = vsyncadd %s209, 0
          %s215 = smul.addr %s23, 4
          %s216 = smul.addr %s215, 4
          %s217 = scalar_lea.hbm %s1, %s216
          %s218 = sshll.u32 %s217, 4
          %s219 = int_to_ptr.hbm [resolvable:$true] %s218
          %s220 = sshll.u32 %s212, 4
          %s221 = int_to_ptr.vmem [resolvable:$true] %s220
          %226 = dma.hbm_to_vmem [thread:$0]  %s219, 256, %s221, %s209, 64, 64, 4
        $region32: #{lstm_model_forward.1} parent=27 // pred_fallthru
          _
        // Predicated region
        $region33: #{lstm_model_forward.1} parent=27 // pred_check
          %p227 = pneg %p99
        $region34: #{lstm_model_forward.1} parent=27 // pred_check_branch
          %229 = sbr.rel (%p227) target = $region36
        $region35: #{lstm_model_forward.1} parent=27 // pred_region
          %p230 = scmp.lt.s32.totalorder %s23, 1
          %s231 = scalar_select %p230, %s23, 1
          %s232 = scalar_lea.vmem %s2, %s231
        $region36: #{lstm_model_forward.1} parent=27 // pred_fallthru
          _
      $region28: #{lstm_model_forward.1} parent=5 // pred_fallthru
        _
      %p233 = scmp.le.s32.totalorder 1, %s15
      %p234 = scmp.lt.s32.totalorder %s15, 3
      %p235 = pnand %p233, %p234
      %p236 = pneg %p235
      // Predicated region
      $region37: #{lstm_model_forward.1} parent=5 // pred_check
        _
      $region38: #{lstm_model_forward.1} parent=5 // pred_check_branch
        %238 = sbr.rel (%p235) target = $region40
      $region39: #{lstm_model_forward.1} parent=5 // pred_region
        %s239 = ssub.s32 %s15, 1
        %s240 = sand.u32 %s66, 1
        %s241 = scalar_lea.sflag [#allocation4], %s240
        %s242 = sand.u32 %s66, 1
        %s243 = smul.addr %s242, 16
        %s244 = scalar_lea.vmem [#allocation3], %s243
        // Predicated region
        $region41: #{lstm_model_forward.1} parent=39 // pred_check
          %p245 = pneg %p79
        $region42: #{lstm_model_forward.1} parent=39 // pred_check_branch
          %247 = sbr.rel (%p245) target = $region44
        $region43: #{lstm_model_forward.1} parent=39 // pred_region
          %249 = dma.done %s241, 256
        $region44: #{lstm_model_forward.1} parent=39 // pred_fallthru
          _
        %p250 = scmp.lt.s32.totalorder %s24, 0
        %s251 = scalar_select %p250, %s24, 0
        %s252 = smul.addr %s251, 8
        %s253 = scalar_lea.vmem %s0, %s252
        %p254 = pneg %p53
        %p255 = pneg %p50
        %s256 = sand.u32 %s66, 1
        %s257 = scalar_lea.sflag [#allocation4], %s256
        %s258 = sand.u32 %s66, 1
        %s259 = smul.addr %s258, 16
        %s260 = scalar_lea.vmem [#allocation3], %s259
        %p261 = pneg %p79
        %p262 = pneg %p76
        %p263 = scmp.lt.s32.totalorder %s25, 1
        %s264 = scalar_select %p263, %s25, 1
        %s265 = scalar_lea.vmem %s2, %s264
        %p266 = pneg %p105
        %p267 = pneg %p102
        %p268 = pneg %p126
        %p269 = pneg %p123
        %p270 = pneg %p147
        %p271 = pneg %p144
        %p272 = pneg %p173
        %p273 = pneg %p170
        %p274 = scmp.lt.s32.totalorder %s24, 0
        %s275 = scalar_select %p274, %s24, 0
        %s276 = smul.addr %s275, 8
        %s277 = scalar_lea.vmem %s0, %s276
        %p278 = scmp.lt.s32.totalorder %s25, 1
        %s279 = scalar_select %p278, %s25, 1
        %s280 = scalar_lea.vmem %s2, %s279
        %p282 = scmp.eq.s32.totalorder %s25, 0
        // Predicated region
        $region45: #{lstm_model_forward.1} parent=39 // pred_check
          %p283 = pneg %p282
        $region46: #{lstm_model_forward.1} parent=39 // pred_check_branch
          %285 = sbr.rel (%p283) target = $region48
        $region47: #{lstm_model_forward.1} parent=39 // pred_region
          %v286 = vld [vmem:[%s277] sm:$0xff]
          %vm287 = vcmask 261120
          %288 = vst.msk [vmem:[#allocation2] sm:$0xff] %vm287, %v286
        $region48: #{lstm_model_forward.1} parent=39 // pred_fallthru
          _
        %v289 = vld [vmem:[%s244] sm:$0xf]
        %v290 = vld [vmem:[%s244 + $0x4] sm:$0xf]
        %v291 = vld [vmem:[%s244 + $0x8] sm:$0xf]
        %v292 = vld [vmem:[%s244 + $0xc] sm:$0xf]
        %v293 = vld [vmem:[%s280] sm:$0x1]
        %v294 = vld [vmem:[#allocation2] sm:$0xff]
        %v296 = vperm.slane %v293, 0
        %v302 = vunpack.c.l.b16 %v289
        %v303 = vunpack.c.l.b16 %v290
        %v304 = vunpack.c.l.b16 %v291
        %v305 = vunpack.c.l.b16 %v292
        %v306 = vpack.c.b16 %v303, %v302
        %v307 = vpack.c.b16 %v305, %v304
        %vm310 = vcmask 261120
        %v312 = vsel %vm310, %v294, 0
        %314 = vmatpush.bf16.msra.mxu0 0
        %315 = vmatpush.bf16.msra.mxu0 0
        %316 = vmatpush.bf16.msra.mxu0 0
        %317 = vmatpush.bf16.msra.mxu0 0
        %318 = vmatpush.bf16.msra.mxu0 0
        %319 = vmatpush.bf16.msra.mxu0 0
        %320 = vmatpush.bf16.msra.mxu0 %v307
        %321 = vmatpush.bf16.msra.mxu0 %v306
        %322 = vmatmul.f32.gmra.mxu0 %v312
        %v323 = vpop.f32.mrf.mxu0
        %v324 = vadd.f32 %v296, %v323
        %325 = vdwg.mxu0
        %v326 = vxor.u32 %v324, 2147483648
        %v327 = vmul.f32 %v326, 1.442695
        %v328 = vpow.pop %v327
        %v329 = vadd.f32 %v328, 1.0
        %v330 = vrcp.pop %v329
        %v331 = vmul.f32 %v329, %v330
        %v332 = vsub.f32 1.0, %v331
        %v333 = vmul.f32 %v330, %v332
        %v334 = vadd.f32 %v330, %v333
        %vm335 = vweird.f32 %v329
        %vm336 = vweird.f32 %v330
        %vm337 = vmor %vm335, %vm336
        %v338 = vsel %vm337, %v330, %v334
        %v339 = vand.u32 2147483647, %v329
        %vm340 = vcmp.eq.f32.partialorder %v339, 8.507059e+37
        %v341 = vand.u32 %v329, 2147483648
        %v342 = vor.u32 1.1754944e-38, %v341
        %v343 = vsel %vm340, %v342, %v338
        %v344 = vmul.f32 1.0, %v343
        %v345 = vtanh.pop %v324
        %347 = vrot.lane.b32.xlu0 %v345, 64
        %v348 = vpop.permute.xlu0 %347
        %v350 = vmul.f32 %v344, %v348
        %v351 = vtanh.pop %v350
        %353 = vrot.lane.b32.xlu0 %v351, 32
        %v354 = vpop.permute.xlu0 %353
        %v356 = vmul.f32 %v344, %v354
        %p357 = scmp.eq.s32.totalorder %s25, 1
        // Predicated region
        $region49: #{lstm_model_forward.1} parent=39 // pred_check
          %p358 = pneg %p357
        $region50: #{lstm_model_forward.1} parent=39 // pred_check_branch
          %360 = sbr.rel (%p358) target = $region52
        $region51: #{lstm_model_forward.1} parent=39 // pred_region
          %v361 = vld [vmem:[%s3] sm:$0xf]
          %v362 = vld [vmem:[%s3 + $0x4] sm:$0xf]
          %v363 = vld [vmem:[%s3 + $0x8] sm:$0xf]
          %v364 = vld [vmem:[%s3 + $0xc] sm:$0xf]
          %v365 = vld [vmem:[%s4] sm:$0x1]
          %v367 = vperm.slane %v365, 0
          %370 = vrot.lane.b32.xlu0 %v356, 96
          %v371 = vpop.permute.xlu0 %370
          %v376 = vunpack.c.l.b16 %v361
          %v377 = vunpack.c.l.b16 %v362
          %v378 = vunpack.c.l.b16 %v363
          %v379 = vunpack.c.l.b16 %v364
          %v380 = vpack.c.b16 %v377, %v376
          %v381 = vpack.c.b16 %v379, %v378
          %v384 = vsel %vm310, %v371, 0
          %386 = vmatpush.bf16.msra.mxu0 0
          %387 = vmatpush.bf16.msra.mxu0 0
          %388 = vmatpush.bf16.msra.mxu0 0
          %389 = vmatpush.bf16.msra.mxu0 0
          %390 = vmatpush.bf16.msra.mxu0 0
          %391 = vmatpush.bf16.msra.mxu0 0
          %392 = vmatpush.bf16.msra.mxu0 %v381
          %393 = vmatpush.bf16.msra.mxu0 %v380
          %394 = vmatmul.f32.gmra.mxu0 %v384
          %v395 = vpop.f32.mrf.mxu0
          %v396 = vadd.f32 %v367, %v395
          %397 = vdwg.mxu0
          %398 = vst [vmem:[#allocation6] sm:$0xff] %v396
        $region52: #{lstm_model_forward.1} parent=39 // pred_fallthru
          _
        %400 = vrot.lane.b32.xlu0 %v356, 96
        %v401 = vpop.permute.xlu0 %400
        %403 = vst.msk [vmem:[#allocation2] sm:$0xff] %vm310, %v401
        // Predicated region
        $region53: #{lstm_model_forward.1} parent=39 // pred_check
          %p404 = pneg %p170
        $region54: #{lstm_model_forward.1} parent=39 // pred_check_branch
          %406 = sbr.rel (%p404) target = $region56
        $region55: #{lstm_model_forward.1} parent=39 // pred_region
          %408 = vsyncadd [#allocation5], 0
          %s409 = smul.addr %s24, 8
          %s410 = scalar_lea.hbm %s5, %s409
          %s412 = sshll.u32 [#allocation6], 4
          %s413 = int_to_ptr.vmem [resolvable:$true] %s412
          %s414 = sshll.u32 %s410, 4
          %s415 = int_to_ptr.hbm [resolvable:$true] %s414
          %417 = dma.vmem_to_hbm [thread:$0]  %s413, 128, %s415, [#allocation5]
        $region56: #{lstm_model_forward.1} parent=39 // pred_fallthru
          _
        // Predicated region
        $region57: #{lstm_model_forward.1} parent=39 // pred_check
          %p418 = pneg %p170
        $region58: #{lstm_model_forward.1} parent=39 // pred_check_branch
          %420 = sbr.rel (%p418) target = $region60
        $region59: #{lstm_model_forward.1} parent=39 // pred_region
          %422 = dma.done [#allocation5], 128
        $region60: #{lstm_model_forward.1} parent=39 // pred_fallthru
          _
      $region40: #{lstm_model_forward.1} parent=5 // pred_fallthru
        _
      %p423 = scmp.le.s32.totalorder 2, %s15
      // Predicated region
      $region61: #{lstm_model_forward.1} parent=5 // pred_check
        %p424 = pneg %p423
      $region62: #{lstm_model_forward.1} parent=5 // pred_check_branch
        %426 = sbr.rel (%p424) target = $region64
      $region63: #{lstm_model_forward.1} parent=5 // pred_region
        %s427 = ssub.s32 %s15, 2
      $region64: #{lstm_model_forward.1} parent=5 // pred_fallthru
        _
    $region6: #{lstm_model_forward.1} parent=1 // loop_footer
      %s19 = sadd.s32 1, %s15
    $region7: #{lstm_model_forward.1} parent=1 // loop_footer_branch
      %14 = sbr.rel target = $region3
    $region8: #{lstm_model_forward.1} parent=1 // loop_exit
      _
    %428 = vsyncpa [#allocation4], 1
    %s429 = scalar_lea.sflag [#allocation4], 1
    %430 = vsyncpa %s429, 1
    %431 = vsyncpa [#allocation5], 1
    %s432 = scalar_lea.sflag [#allocation5], 1
    %433 = vsyncpa %s432, 1

</llo_original>
